<compile_context>
chip_gen: v6e
topology: v6e:2x2x1
jax: 0.10.0
libtpu: 0.0.40
codegen_flags: <defaults>
</compile_context>

<pallas_src>
import functools
import math

import jax
import jax.numpy as jnp
from jax.experimental import pallas as pl
from jax.experimental.pallas import tpu as pltpu


# -----------------------------------------------------------------------------
# Pallas kernels
# -----------------------------------------------------------------------------
def _matmul_fused_kernel(*refs, relu, add_residual):
    """One (tm, Kp) @ (Kp, tn) MXU matmul + bias (+ residual) (+ ReLU). Grid = (M/tm, N/tn)."""
    if add_residual:
        a_ref, b_ref, bias_ref, res_ref, o_ref = refs
    else:
        a_ref, b_ref, bias_ref, o_ref = refs
    acc = jnp.dot(a_ref[...], b_ref[...], preferred_element_type=jnp.float32)
    acc = acc + bias_ref[...]
    if add_residual:
        acc = acc + res_ref[...]
    if relu:
        acc = jnp.maximum(acc, 0.0)
    o_ref[...] = acc.astype(o_ref.dtype)


def _maxpool_kernel(p_ref, o_ref):
    # p_ref: (rows, 9, C) -> max over the 9 window taps (3x3 max pool)
    o_ref[...] = jnp.max(p_ref[...], axis=1)


def _head_kernel(y_ref, w0_ref, b0_ref, w1_ref, b1_ref, wc_ref, bc_ref, o_ref, *, hidden):
    """Fused head: adaptive-avg-pool(1,1) + 2-layer bidirectional LSTM (seq_len == 1, zero
    initial state) + classifier.  Gate layout per weight slab: [fwd(i,f,g,o) | bwd(i,f,g,o)],
    each gate `hidden` wide.  With c0 == 0 the f-gate contributes nothing and is dropped."""
    H = hidden
    feats = jnp.mean(y_ref[...], axis=1)                       # (B, 512)

    def bidir_step(x, w, b):
        gates = jnp.dot(x.astype(jnp.bfloat16), w,
                        preferred_element_type=jnp.float32) + b

        def one_dir(g):
            i = jax.nn.sigmoid(g[:, 0 * H:1 * H])
            c = i * jnp.tanh(g[:, 2 * H:3 * H])                # c = i*g  (f*c0 == 0)
            o = jax.nn.sigmoid(g[:, 3 * H:4 * H])
            return o * jnp.tanh(c)

        return jnp.concatenate([one_dir(gates[:, :4 * H]),
                                one_dir(gates[:, 4 * H:])], axis=-1)

    h0 = bidir_step(feats, w0_ref[...], b0_ref[...])           # (B, 512)
    h1 = bidir_step(h0, w1_ref[...], b1_ref[...])              # (B, 512) == rnn_out[:, -1, :]
    logits = jnp.dot(h1.astype(jnp.bfloat16), wc_ref[...],
                     preferred_element_type=jnp.float32) + bc_ref[...]
    o_ref[...] = logits


# -----------------------------------------------------------------------------
# Wrappers
# -----------------------------------------------------------------------------
def _round_up(x, m):
    return (x + m - 1) // m * m


_VMEM_LIMIT = 48 * 1024 * 1024


def pallas_matmul(a, b, bias, relu=False, residual=None):
    """a: (M,K) f32, b: (K,N) f32, bias: (N,) f32, residual: (M, Np) f32 or None.
    Returns (M, Np) f32 with Np = round_up(N, 128) (lane-dense, padded cols are exact zeros
    whenever the padded weight cols / bias are zero)."""
    M, K = a.shape
    _, N = b.shape
    tm = min(128, _round_up(max(M, 8), 8))
    Np = _round_up(N, 128)
    tn = 256 if Np % 256 == 0 else 128
    Kp = _round_up(K, 128)
    Mp = _round_up(M, tm)

    a_p = jnp.pad(a, ((0, Mp - M), (0, Kp - K))).astype(jnp.bfloat16)
    b_p = jnp.pad(b, ((0, Kp - K), (0, Np - N))).astype(jnp.bfloat16)
    bias_p = jnp.pad(bias.reshape(1, -1), ((0, 0), (0, Np - N)))

    inputs = [a_p, b_p, bias_p]
    in_specs = [
        pl.BlockSpec((tm, Kp), lambda i, j: (i, 0)),
        pl.BlockSpec((Kp, tn), lambda i, j: (0, j)),
        pl.BlockSpec((1, tn), lambda i, j: (0, j)),
    ]
    add_residual = residual is not None
    if add_residual:
        r = residual
        r_p = jnp.pad(r, ((0, Mp - r.shape[0]), (0, Np - r.shape[1])))
        inputs.append(r_p)
        in_specs.append(pl.BlockSpec((tm, tn), lambda i, j: (i, j)))

    out = pl.pallas_call(
        functools.partial(_matmul_fused_kernel, relu=relu, add_residual=add_residual),
        out_shape=jax.ShapeDtypeStruct((Mp, Np), jnp.float32),
        grid_spec=pltpu.PrefetchScalarGridSpec(
            num_scalar_prefetch=0,
            grid=(Mp // tm, Np // tn),
            in_specs=in_specs,
            out_specs=pl.BlockSpec((tm, tn), lambda i, j: (i, j)),
        ),
        compiler_params=pltpu.CompilerParams(
            dimension_semantics=("parallel", "parallel"),
            vmem_limit_bytes=_VMEM_LIMIT),
    )(*inputs)
    return out[:M, :]


def conv2d(x_nhwc, w_oihw, bias, stride, pad, relu, residual=None):
    """PyTorch-semantics conv (cross-correlation) via im2col + fused Pallas matmul.
    x may carry zero-padded extra channels; the weight's Cin is zero-padded to match.
    Output channels are returned padded to a multiple of 128 (padded channels == 0)."""
    cout, cin_w, kh, kw = w_oihw.shape
    C = x_nhwc.shape[-1]
    if C > cin_w:
        w_oihw = jnp.pad(w_oihw, ((0, 0), (0, C - cin_w), (0, 0), (0, 0)))
    x_p = jnp.pad(x_nhwc, ((0, 0), (pad, pad), (pad, pad), (0, 0)))
    N, H, W, _ = x_p.shape
    oh = (H - kh) // stride + 1
    ow = (W - kw) // stride + 1
    taps = [x_p[:, i:i + stride * oh:stride, j:j + stride * ow:stride, :]
            for i in range(kh) for j in range(kw)]
    patches = jnp.concatenate(taps, axis=-1).reshape(N * oh * ow, kh * kw * C)
    # weight (Cout, Cin, KH, KW) -> (KH, KW, Cin, Cout) -> (KH*KW*Cin, Cout); matches tap order.
    w_mat = jnp.transpose(w_oihw, (2, 3, 1, 0)).reshape(kh * kw * C, cout)
    res_flat = None
    if residual is not None:
        res_flat = residual.reshape(N * oh * ow, residual.shape[-1])
    y = pallas_matmul(patches, w_mat, bias, relu=relu, residual=res_flat)
    return y.reshape(N, oh, ow, y.shape[-1])


def maxpool_3x3_s2_p1(x_nhwc):
    # Input is post-ReLU (non-negative), so zero padding is equivalent to PyTorch's -inf padding
    # and keeps zero-padded channels exactly zero.
    x_p = jnp.pad(x_nhwc, ((0, 0), (1, 1), (1, 1), (0, 0)))
    N, H, W, C = x_p.shape
    oh = (H - 3) // 2 + 1
    ow = (W - 3) // 2 + 1
    taps = [x_p[:, i:i + 2 * oh:2, j:j + 2 * ow:2, :]
            for i in range(3) for j in range(3)]
    patches = jnp.stack(taps, axis=3).reshape(N * oh * ow, 9, C)
    out = pl.pallas_call(
        _maxpool_kernel,
        out_shape=jax.ShapeDtypeStruct((N * oh * ow, C), jnp.float32),
    )(patches)
    return out.reshape(N, oh, ow, C)


def head_forward(y_flat, params):
    """y_flat: (B, H*W, 512) -> logits (B, num_classes) via the fused head kernel."""
    L = params['lstm']
    B = y_flat.shape[0]
    nc = params['cls_b'].shape[0]
    ncp = _round_up(nc, 128)
    w0 = L['w0'].astype(jnp.bfloat16)                     # (512, 2048)
    w1 = L['w1'].astype(jnp.bfloat16)                     # (512, 2048)
    wc = jnp.pad(params['cls_w_t'], ((0, 0), (0, ncp - nc))).astype(jnp.bfloat16)
    bc = jnp.pad(params['cls_b'].reshape(1, -1), ((0, 0), (0, ncp - nc)))
    out = pl.pallas_call(
        functools.partial(_head_kernel, hidden=256),
        out_shape=jax.ShapeDtypeStruct((B, ncp), jnp.float32),
        compiler_params=pltpu.CompilerParams(vmem_limit_bytes=_VMEM_LIMIT),
    )(y_flat, w0, L['b0'], w1, L['b1'], wc, bc)
    return out[:, :nc]


# -----------------------------------------------------------------------------
# Deterministic parameter construction (synthetic — no checkpoint load)
# -----------------------------------------------------------------------------
def init_params(key, num_classes):
    bn_eps = 1e-5
    bn_scale = 1.0 / math.sqrt(1.0 + bn_eps)  # eval-mode BN with default stats, folded into conv
    keys = iter(jax.random.split(key, 64))

    def conv_w(cout, cin, k):
        w = jax.random.normal(next(keys), (cout, cin, k, k), jnp.float32)
        return w * math.sqrt(2.0 / (cin * k * k)) * bn_scale

    zeros = lambda c: jnp.zeros((c,), jnp.float32)

    p = {'conv1_w': conv_w(64, 3, 7), 'conv1_b': zeros(64)}

    layer_cfg = [(64, 1), (128, 2), (256, 2), (512, 2)]
    in_c = 64
    layers = []
    for cout, stride0 in layer_cfg:
        blocks = []
        for bi in range(2):
            s = stride0 if bi == 0 else 1
            blk = {
                'stride': s,
                'conv1_w': conv_w(cout, in_c, 3), 'conv1_b': zeros(cout),
                'conv2_w': conv_w(cout, cout, 3), 'conv2_b': zeros(cout),
            }
            if s != 1 or in_c != cout:
                blk['down_w'] = conv_w(cout, in_c, 1)
                blk['down_b'] = zeros(cout)
            blocks.append(blk)
            in_c = cout
        layers.append(blocks)
    p['layers'] = layers

    # LSTM: 2 layers, bidirectional, hidden 256, input 512.  seq_len == 1, zero initial state:
    # W_hh contributes nothing (h0 @ W_hh^T == 0) but b_hh still adds -> fold b = b_ih + b_hh.
    # Both directions of a layer are concatenated into one (in, 8H) slab for a single matmul.
    H = 256
    kL = 1.0 / math.sqrt(H)

    def lstm_layer(in_size):
        def one_dir():
            w_ih = jax.random.uniform(next(keys), (4 * H, in_size), jnp.float32, -kL, kL)
            b_ih = jax.random.uniform(next(keys), (4 * H,), jnp.float32, -kL, kL)
            b_hh = jax.random.uniform(next(keys), (4 * H,), jnp.float32, -kL, kL)
            return w_ih.T, b_ih + b_hh
        wf, bf = one_dir()
        wb, bb = one_dir()
        return jnp.concatenate([wf, wb], axis=1), jnp.concatenate([bf, bb]).reshape(1, -1)

    w0, b0 = lstm_layer(512)
    w1, b1 = lstm_layer(2 * H)
    p['lstm'] = {'w0': w0, 'b0': b0, 'w1': w1, 'b1': b1}

    kC = 1.0 / math.sqrt(2 * H)
    cw = jax.random.uniform(next(keys), (num_classes, 2 * H), jnp.float32, -kC, kC)
    cb = jax.random.uniform(next(keys), (num_classes,), jnp.float32, -kC, kC)
    p['cls_w_t'] = cw.T
    p['cls_b'] = cb
    return p


# -----------------------------------------------------------------------------
# Forward pass == LicensePlateOCR.forward
# -----------------------------------------------------------------------------
def basic_block(x, blk):
    s = blk['stride']
    out = conv2d(x, blk['conv1_w'], blk['conv1_b'], stride=s, pad=1, relu=True)
    if 'down_w' in blk:
        identity = conv2d(x, blk['down_w'], blk['down_b'], stride=s, pad=0, relu=False)
    else:
        identity = x
    # conv2 + BN + residual add + ReLU fused into one matmul epilogue.
    return conv2d(out, blk['conv2_w'], blk['conv2_b'], stride=1, pad=1,
                  relu=True, residual=identity)


def license_plate_ocr_forward(x_nchw, params):
    x = jnp.transpose(x_nchw, (0, 2, 3, 1)).astype(jnp.float32)  # NCHW -> NHWC

    # ResNet-18 feature extractor (fc replaced by Identity)
    y = conv2d(x, params['conv1_w'], params['conv1_b'], stride=2, pad=3, relu=True)
    y = maxpool_3x3_s2_p1(y)
    for blocks in params['layers']:
        for blk in blocks:
            y = basic_block(y, blk)

    B = y.shape[0]
    y_flat = y.reshape(B, -1, y.shape[-1])        # (B, H*W, 512)
    # Fused: adaptive avg pool (1,1) + biLSTM layer 0 + biLSTM layer 1 + classifier.
    logits = head_forward(y_flat, params)
    return logits


if __name__ == "__main__":
    num_classes = 36
    key = jax.random.PRNGKey(0)
    params = init_params(key, num_classes)

    x = jax.random.normal(jax.random.PRNGKey(0), (2, 3, 32, 32), jnp.float32)  # NCHW
    logits = license_plate_ocr_forward(x, params)
    logits = jax.block_until_ready(logits)

    assert logits.shape == (2, num_classes), logits.shape
    assert logits.dtype == jnp.float32
    assert bool(jnp.all(jnp.isfinite(logits)))
    print("KERNEL_OK")
</pallas_src>

<mosaic_0001>
module attributes {stable_mosaic.version = 11 : i64} {
  func.func @_matmul_fused_kernel(%arg0: i32, %arg1: i32, %arg2: memref<128x256xbf16, #tpu.memory_space<vmem>>, %arg3: memref<256x128xbf16, #tpu.memory_space<vmem>>, %arg4: memref<1x128xf32, #tpu.memory_space<vmem>>, %arg5: memref<128x128xf32, #tpu.memory_space<vmem>>) attributes {dimension_semantics = [#tpu.dimension_semantics<parallel>, #tpu.dimension_semantics<parallel>], iteration_bounds = array<i64: 4, 1>, scalar_prefetch = 0 : i64, scratch_operands = 0 : i64, tpu.core_type = #tpu.core_type<tc>, window_params = [{transform_indices = @transform_0, window_bounds = array<i64: 128, 256>}, {transform_indices = @transform_1, window_bounds = array<i64: 256, 128>}, {transform_indices = @transform_2, window_bounds = array<i64: 1, 128>}, {transform_indices = @transform_3, window_bounds = array<i64: 128, 128>}]} {
    %c0 = arith.constant 0 : index
    %c0_0 = arith.constant 0 : index
    %0 = vector.load %arg2[%c0, %c0_0] : memref<128x256xbf16, #tpu.memory_space<vmem>>, vector<128x256xbf16>
    %c0_1 = arith.constant 0 : index
    %c0_2 = arith.constant 0 : index
    %1 = vector.load %arg3[%c0_1, %c0_2] : memref<256x128xbf16, #tpu.memory_space<vmem>>, vector<256x128xbf16>
    %cst = arith.constant dense<0.000000e+00> : vector<128x128xf32>
    %2 = tpu.matmul %0, %1, %cst {dimension_numbers = #tpu.dot_dimension_numbers<[1], [0], [0], [1], [0, 0, 1, 1], [], []>} : vector<128x256xbf16>, vector<256x128xbf16>, vector<128x128xf32> -> vector<128x128xf32>
    %c0_3 = arith.constant 0 : index
    %c0_4 = arith.constant 0 : index
    %3 = vector.load %arg4[%c0_3, %c0_4] : memref<1x128xf32, #tpu.memory_space<vmem>>, vector<1x128xf32>
    %4 = vector.broadcast %3 : vector<1x128xf32> to vector<128x128xf32>
    %5 = arith.addf %2, %4 : vector<128x128xf32>
    %cst_5 = arith.constant 0.000000e+00 : f32
    %6 = vector.broadcast %cst_5 : f32 to vector<128x128xf32>
    %7 = arith.maximumf %5, %6 : vector<128x128xf32>
    %c0_6 = arith.constant 0 : index
    %c0_7 = arith.constant 0 : index
    %8 = vector.load %arg5[%c0_6, %c0_7] : memref<128x128xf32, #tpu.memory_space<vmem>>, vector<128x128xf32>
    tpu.vector_store %arg5[%c0_6, %c0_7], %7 {strides = array<i32>} : memref<128x128xf32, #tpu.memory_space<vmem>>, vector<128x128xf32>,
    return
  }
  func.func @transform_0(%arg0: i32, %arg1: i32) -> (i32, i32) {
    %c0_i32 = arith.constant 0 : i32
    %c0_i32_0 = arith.constant 0 : i32
    return %arg0, %c0_i32 : i32, i32
  }
  func.func @transform_1(%arg0: i32, %arg1: i32) -> (i32, i32) {
    %c0_i32 = arith.constant 0 : i32
    %c0_i32_0 = arith.constant 0 : i32
    return %c0_i32, %arg1 : i32, i32
  }
  func.func @transform_2(%arg0: i32, %arg1: i32) -> (i32, i32) {
    %c0_i32 = arith.constant 0 : i32
    %c0_i32_0 = arith.constant 0 : i32
    return %c0_i32, %arg1 : i32, i32
  }
  func.func @transform_3(%arg0: i32, %arg1: i32) -> (i32, i32) {
    %c0_i32 = arith.constant 0 : i32
    return %arg0, %arg1 : i32, i32
  }
}

</mosaic_0001>

<llo_original>
// kernel: tpu_custom_call.1
$region0: #{tpu_custom_call.1}
  #allocation0 [shape = 'u32[]', space=smem, size = 0x4, offset = 0x4, fixed_abs, tag = 'smem constant byte address 0x4 - core index']
  #allocation1 [shape = 'u32[144,128]{1,0:T(1,128)}', space=vmem, size = 0x12000, scoped, tag = 'internal scratch']
  %s0 = inlined_call_operand.hbm [shape: bf16[512,256], index: 0, kind: input, shape index: {}]
  %s1 = inlined_call_operand.hbm [shape: bf16[256,128], index: 1, kind: input, shape index: {}]
  %s2 = inlined_call_operand.vmem [shape: f32[1,128], index: 2, kind: input, shape index: {}]
  %s3 = inlined_call_operand.hbm [shape: f32[512,128], index: 3, kind: output, shape index: {}]
  %s4 = sld [smem:[#allocation0]]
  $region53: #{tpu_custom_call.1} parent=0
    _
  %s6 = ssub.s32 1, %s4
  %s7 = scalar_select 0, %s6, %s4
  $region1: #{tpu_custom_call.1} parent=0
    #allocation2 [shape = 'u8[131072]{0}', space=vmem, size = 0x20000, scoped, tag = 'input window, operand 0']
    #allocation3 [shape = 's32[2]{0}', space=sflag, size = 0x8, scoped, tag = 'scoped memory for tpu_custom_call.1']
    #allocation4 [shape = 's32[2]{0}', space=sflag, size = 0x8, scoped, tag = 'scoped memory for tpu_custom_call.1']
    #allocation5 [shape = 'u8[65536]{0}', space=vmem, size = 0x10000, scoped, tag = 'input window, operand 1, single buffered']
    #allocation6 [shape = 's32[1]{0}', space=sflag, size = 0x4, scoped, tag = 'scoped memory for tpu_custom_call.1']
    #allocation7 [shape = 'u8[131072]{0}', space=vmem, size = 0x20000, scoped, tag = 'output window, operand 0']
    %8 = vsyncpa [#allocation3], 0
    %s9 = scalar_lea.sflag [#allocation3], 1
    %10 = vsyncpa %s9, 0
    %11 = vsyncpa [#allocation6], 0
    %12 = vsyncpa [#allocation4], 0
    %s13 = scalar_lea.sflag [#allocation4], 1
    %14 = vsyncpa %s13, 0
    loop: start=0, step=1, limit=6
    $region2: #{tpu_custom_call.1} parent=1 // loop_pre_header
      _
    $region3: #{tpu_custom_call.1} parent=1 // loop_header
      %s16 = sphi 0, %s20
      %p17 = scmp.ge.s32.totalorder %s16, 6
      %s23 = sphi 0, %s35
      %s24 = sphi 0, %s31
      %s25 = sphi 0, %s23
      %s26 = sphi 0, %s24
      %s27 = sphi 0, %s25
      %s28 = sphi 0, %s26
      %s38 = sphi 0, %s40
      %s41 = sphi 0, %s38
      %s42 = sphi 0, %s41
      %s58 = sphi 0, %s42
      %s64 = sphi 0, %s66
      %s67 = sphi 0, %s64
      %s68 = sphi 0, %s67
      %s84 = sphi 0, %s68
      %s90 = sphi 0, %s92
      %s93 = sphi 0, %s90
      %s94 = sphi 0, %s93
      %s110 = sphi 0, %s94
      %s118 = sphi 0, %s120
      %s121 = sphi 0, %s118
      %s122 = sphi 0, %s121
      %s138 = sphi 0, %s122
    $region4: #{tpu_custom_call.1} parent=1 // loop_header_branch
      %19 = sbr.rel (%p17) target = $region8
    $region5: #{tpu_custom_call.1} parent=1 // loop_body
      %s21 = ssub.s32 %s16, 1
      %s22 = ssub.s32 %s16, 2
      %s29 = sadd.s32 1, %s24
      %p30 = scmp.ge.s32.totalorder %s29, 1
      %s31 = scalar_select %p30, 0, %s29
      %s32 = sadd.s32 1, %s23
      %s33 = scalar_select %p30, %s32, %s23
      %p34 = scmp.ge.s32.totalorder %s33, 4
      %s35 = scalar_select %p34, 0, %s33
      %s36 = ssub.s32 %s23, %s35
      %p37 = scmp.eq.s32.totalorder %s36, 0
      %s39 = sadd.s32 %s38, 1
      %s40 = scalar_select %p37, %s38, %s39
      %p43 = pneg %p37
      %p44 = scmp.eq.s32.totalorder %s16, 3
      %p45 = por %p43, %p44
      %p46 = scmp.ne.s32.totalorder %s38, %s41
      %p47 = scmp.eq.s32.totalorder %s16, 0
      %p48 = por %p46, %p47
      %p49 = scmp.ne.s32.totalorder %s38, %s41
      %p50 = scmp.eq.s32.totalorder %s21, 3
      %p51 = por %p49, %p50
      %p52 = scmp.ne.s32.totalorder %s41, %s42
      %p53 = scmp.eq.s32.totalorder %s21, 0
      %p54 = por %p52, %p53
      %p55 = scmp.ne.s32.totalorder %s41, %s42
      %p56 = scmp.eq.s32.totalorder %s22, 3
      %p57 = por %p55, %p56
      %p59 = scmp.ne.s32.totalorder %s42, %s58
      %p60 = scmp.eq.s32.totalorder %s22, 0
      %p61 = por %p59, %p60
      %s62 = ssub.s32 %s24, %s31
      %p63 = scmp.eq.s32.totalorder %s62, 0
      %s65 = sadd.s32 %s64, 1
      %s66 = scalar_select %p63, %s64, %s65
      %p69 = pneg %p63
      %p70 = scmp.eq.s32.totalorder %s16, 3
      %p71 = por %p69, %p70
      %p72 = scmp.ne.s32.totalorder %s64, %s67
      %p73 = scmp.eq.s32.totalorder %s16, 0
      %p74 = por %p72, %p73
      %p75 = scmp.ne.s32.totalorder %s64, %s67
      %p76 = scmp.eq.s32.totalorder %s21, 3
      %p77 = por %p75, %p76
      %p78 = scmp.ne.s32.totalorder %s67, %s68
      %p79 = scmp.eq.s32.totalorder %s21, 0
      %p80 = por %p78, %p79
      %p81 = scmp.ne.s32.totalorder %s67, %s68
      %p82 = scmp.eq.s32.totalorder %s22, 3
      %p83 = por %p81, %p82
      %p85 = scmp.ne.s32.totalorder %s68, %s84
      %p86 = scmp.eq.s32.totalorder %s22, 0
      %p87 = por %p85, %p86
      %s88 = ssub.s32 %s24, %s31
      %p89 = scmp.eq.s32.totalorder %s88, 0
      %s91 = sadd.s32 %s90, 1
      %s92 = scalar_select %p89, %s90, %s91
      %p95 = pneg %p89
      %p96 = scmp.eq.s32.totalorder %s16, 3
      %p97 = por %p95, %p96
      %p98 = scmp.ne.s32.totalorder %s90, %s93
      %p99 = scmp.eq.s32.totalorder %s16, 0
      %p100 = por %p98, %p99
      %p101 = scmp.ne.s32.totalorder %s90, %s93
      %p102 = scmp.eq.s32.totalorder %s21, 3
      %p103 = por %p101, %p102
      %p104 = scmp.ne.s32.totalorder %s93, %s94
      %p105 = scmp.eq.s32.totalorder %s21, 0
      %p106 = por %p104, %p105
      %p107 = scmp.ne.s32.totalorder %s93, %s94
      %p108 = scmp.eq.s32.totalorder %s22, 3
      %p109 = por %p107, %p108
      %p111 = scmp.ne.s32.totalorder %s94, %s110
      %p112 = scmp.eq.s32.totalorder %s22, 0
      %p113 = por %p111, %p112
      %s114 = ssub.s32 %s23, %s35
      %s115 = ssub.s32 %s24, %s31
      %s116 = sor.u32 %s114, %s115
      %p117 = scmp.eq.s32.totalorder %s116, 0
      %s119 = sadd.s32 %s118, 1
      %s120 = scalar_select %p117, %s118, %s119
      %p123 = pneg %p117
      %p124 = scmp.eq.s32.totalorder %s16, 3
      %p125 = por %p123, %p124
      %p126 = scmp.ne.s32.totalorder %s118, %s121
      %p127 = scmp.eq.s32.totalorder %s16, 0
      %p128 = por %p126, %p127
      %p129 = scmp.ne.s32.totalorder %s118, %s121
      %p130 = scmp.eq.s32.totalorder %s21, 3
      %p131 = por %p129, %p130
      %p132 = scmp.ne.s32.totalorder %s121, %s122
      %p133 = scmp.eq.s32.totalorder %s21, 0
      %p134 = por %p132, %p133
      %p135 = scmp.ne.s32.totalorder %s121, %s122
      %p136 = scmp.eq.s32.totalorder %s22, 3
      %p137 = por %p135, %p136
      %p139 = scmp.ne.s32.totalorder %s122, %s138
      %p140 = scmp.eq.s32.totalorder %s22, 0
      %p141 = por %p139, %p140
      %p142 = scmp.le.s32.totalorder 1, %s16
      %p143 = scmp.lt.s32.totalorder %s16, 5
      %p144 = pnand %p142, %p143
      %p145 = pneg %p144
      // Predicated region
      $region9: #{tpu_custom_call.1} parent=5 // pred_check
        _
      $region10: #{tpu_custom_call.1} parent=5 // pred_check_branch
        %147 = sbr.rel (%p144) target = $region12
      $region11: #{tpu_custom_call.1} parent=5 // pred_region
        %s148 = ssub.s32 %s16, 1
        // Predicated region
        $region13: #{tpu_custom_call.1} parent=11 // pred_check
          %p149 = pneg %p80
        $region14: #{tpu_custom_call.1} parent=11 // pred_check_branch
          %151 = sbr.rel (%p149) target = $region16
        $region15: #{tpu_custom_call.1} parent=11 // pred_region
          %s153 = ssub.s32 2048, 2048
          %154 = vsyncadd [#allocation6], %s153
          %s155 = smul.addr %s26, 64
          %s156 = scalar_lea.hbm %s1, %s155
          %s157 = sshll.u32 [#allocation5], 4
          %s158 = int_to_ptr.vmem [resolvable:$true] %s157
          %163 = dma.hbm_to_vmem [thread:$0]  %s156, 2048, %s158, [#allocation6], 64, 64, 4
        $region16: #{tpu_custom_call.1} parent=11 // pred_fallthru
          _
        // Predicated region
        $region17: #{tpu_custom_call.1} parent=11 // pred_check
          %p164 = pneg %p106
        $region18: #{tpu_custom_call.1} parent=11 // pred_check_branch
          %166 = sbr.rel (%p164) target = $region20
        $region19: #{tpu_custom_call.1} parent=11 // pred_region
          %p167 = scmp.lt.s32.totalorder %s26, 0
          %s168 = scalar_select %p167, %s26, 0
          %s169 = scalar_lea.vmem %s2, %s168
        $region20: #{tpu_custom_call.1} parent=11 // pred_fallthru
          _
      $region12: #{tpu_custom_call.1} parent=5 // pred_fallthru
        _
      %p170 = scmp.lt.s32.totalorder %s16, 4
      // Predicated region
      $region21: #{tpu_custom_call.1} parent=5 // pred_check
        %p171 = pneg %p170
      $region22: #{tpu_custom_call.1} parent=5 // pred_check_branch
        %173 = sbr.rel (%p171) target = $region24
      $region23: #{tpu_custom_call.1} parent=5 // pred_region
        // Predicated region
        $region25: #{tpu_custom_call.1} parent=23 // pred_check
          %p174 = pneg %p48
        $region26: #{tpu_custom_call.1} parent=23 // pred_check_branch
          %176 = sbr.rel (%p174) target = $region28
        $region27: #{tpu_custom_call.1} parent=23 // pred_region
          %s177 = sand.u32 %s38, 1
          %s178 = scalar_lea.sflag [#allocation3], %s177
          %s179 = sand.u32 %s38, 1
          %s180 = smul.addr %s179, 128
          %s181 = scalar_lea.vmem [#allocation2], %s180
          %s182 = smul.u32 16, %s23
          %s184 = ssub.s32 2048, 2048
          %185 = vsyncadd %s178, %s184
          %s186 = smul.addr %s182, 2
          %s187 = smul.addr %s186, 64
          %s188 = scalar_lea.hbm %s0, %s187
          %s189 = sshll.u32 %s181, 4
          %s190 = int_to_ptr.vmem [resolvable:$true] %s189
          %195 = dma.hbm_to_vmem [thread:$0]  %s188, 2048, %s190, %s178, 128, 128, 8
        $region28: #{tpu_custom_call.1} parent=23 // pred_fallthru
          _
      $region24: #{tpu_custom_call.1} parent=5 // pred_fallthru
        _
      %p196 = scmp.le.s32.totalorder 1, %s16
      %p197 = scmp.lt.s32.totalorder %s16, 5
      %p198 = pnand %p196, %p197
      %p199 = pneg %p198
      // Predicated region
      $region29: #{tpu_custom_call.1} parent=5 // pred_check
        _
      $region30: #{tpu_custom_call.1} parent=5 // pred_check_branch
        %201 = sbr.rel (%p198) target = $region32
      $region31: #{tpu_custom_call.1} parent=5 // pred_region
        %s202 = ssub.s32 %s16, 1
        %s203 = sand.u32 %s41, 1
        %s204 = scalar_lea.sflag [#allocation3], %s203
        %s205 = sand.u32 %s41, 1
        %s206 = smul.addr %s205, 128
        %s207 = scalar_lea.vmem [#allocation2], %s206
        // Predicated region
        $region33: #{tpu_custom_call.1} parent=31 // pred_check
          %p208 = pneg %p54
        $region34: #{tpu_custom_call.1} parent=31 // pred_check_branch
          %210 = sbr.rel (%p208) target = $region36
        $region35: #{tpu_custom_call.1} parent=31 // pred_region
          %211 = dma.done %s204, 2048
        $region36: #{tpu_custom_call.1} parent=31 // pred_fallthru
          _
        // Predicated region
        $region37: #{tpu_custom_call.1} parent=31 // pred_check
          %p212 = pneg %p80
        $region38: #{tpu_custom_call.1} parent=31 // pred_check_branch
          %214 = sbr.rel (%p212) target = $region40
        $region39: #{tpu_custom_call.1} parent=31 // pred_region
          %215 = dma.done [#allocation6], 2048
        $region40: #{tpu_custom_call.1} parent=31 // pred_fallthru
          _
        %s216 = sand.u32 %s41, 1
        %s217 = scalar_lea.sflag [#allocation3], %s216
        %s218 = sand.u32 %s41, 1
        %s219 = smul.addr %s218, 128
        %s220 = scalar_lea.vmem [#allocation2], %s219
        %p221 = pneg %p54
        %p222 = pneg %p51
        %p223 = pneg %p80
        %p224 = pneg %p77
        %p225 = scmp.lt.s32.totalorder %s26, 0
        %s226 = scalar_select %p225, %s26, 0
        %s227 = scalar_lea.vmem %s2, %s226
        %p228 = pneg %p106
        %p229 = pneg %p103
        %p230 = pneg %p134
        %p231 = pneg %p131
        %s232 = sand.u32 %s121, 1
        %s233 = scalar_lea.sflag [#allocation4], %s232
        %s234 = sand.u32 %s121, 1
        %s235 = smul.addr %s234, 128
        %s236 = scalar_lea.vmem [#allocation7], %s235
        %s237 = smul.u32 16, %s25
        %p238 = scmp.lt.s32.totalorder %s26, 0
        %s239 = scalar_select %p238, %s26, 0
        %s240 = scalar_lea.vmem %s2, %s239
        %s241 = smul.u32 16, %s25
        %v243 = vld [vmem:[%s207] sm:$0xff]
        %v244 = vld [vmem:[%s207 + $0x8] sm:$0xff]
        %v245 = vld [vmem:[%s207 + $0x10] sm:$0xff]
        %v246 = vld [vmem:[%s207 + $0x18] sm:$0xff]
        %v247 = vld [vmem:[%s207 + $0x20] sm:$0xff]
        %v248 = vld [vmem:[%s207 + $0x28] sm:$0xff]
        %v249 = vld [vmem:[%s207 + $0x30] sm:$0xff]
        %v250 = vld [vmem:[%s207 + $0x38] sm:$0xff]
        %v251 = vld [vmem:[%s207 + $0x40] sm:$0xff]
        %v252 = vld [vmem:[%s207 + $0x48] sm:$0xff]
        %v253 = vld [vmem:[%s207 + $0x50] sm:$0xff]
        %v254 = vld [vmem:[%s207 + $0x58] sm:$0xff]
        %v255 = vld [vmem:[%s207 + $0x60] sm:$0xff]
        %v256 = vld [vmem:[%s207 + $0x68] sm:$0xff]
        %v257 = vld [vmem:[%s207 + $0x70] sm:$0xff]
        %v258 = vld [vmem:[%s207 + $0x78] sm:$0xff]
        %v259 = vld [vmem:[#allocation5] sm:$0xf]
        %v260 = vld [vmem:[#allocation5 + $0x4] sm:$0xf]
        %v261 = vld [vmem:[#allocation5 + $0x8] sm:$0xf]
        %v262 = vld [vmem:[#allocation5 + $0xc] sm:$0xf]
        %v263 = vld [vmem:[#allocation5 + $0x10] sm:$0xf]
        %v264 = vld [vmem:[#allocation5 + $0x14] sm:$0xf]
        %v265 = vld [vmem:[#allocation5 + $0x18] sm:$0xf]
        %v266 = vld [vmem:[#allocation5 + $0x1c] sm:$0xf]
        %v267 = vld [vmem:[#allocation5 + $0x20] sm:$0xf]
        %v268 = vld [vmem:[#allocation5 + $0x24] sm:$0xf]
        %v269 = vld [vmem:[#allocation5 + $0x28] sm:$0xf]
        %v270 = vld [vmem:[#allocation5 + $0x2c] sm:$0xf]
        %v271 = vld [vmem:[#allocation5 + $0x30] sm:$0xf]
        %v272 = vld [vmem:[#allocation5 + $0x34] sm:$0xf]
        %v273 = vld [vmem:[#allocation5 + $0x38] sm:$0xf]
        %v274 = vld [vmem:[#allocation5 + $0x3c] sm:$0xf]
        %v275 = vld [vmem:[#allocation5 + $0x40] sm:$0xf]
        %v276 = vld [vmem:[#allocation5 + $0x44] sm:$0xf]
        %v277 = vld [vmem:[#allocation5 + $0x48] sm:$0xf]
        %v278 = vld [vmem:[#allocation5 + $0x4c] sm:$0xf]
        %v279 = vld [vmem:[#allocation5 + $0x50] sm:$0xf]
        %v280 = vld [vmem:[#allocation5 + $0x54] sm:$0xf]
        %v281 = vld [vmem:[#allocation5 + $0x58] sm:$0xf]
        %v282 = vld [vmem:[#allocation5 + $0x5c] sm:$0xf]
        %v283 = vld [vmem:[#allocation5 + $0x60] sm:$0xf]
        %v284 = vld [vmem:[#allocation5 + $0x64] sm:$0xf]
        %v285 = vld [vmem:[#allocation5 + $0x68] sm:$0xf]
        %v286 = vld [vmem:[#allocation5 + $0x6c] sm:$0xf]
        %v287 = vld [vmem:[#allocation5 + $0x70] sm:$0xf]
        %v288 = vld [vmem:[#allocation5 + $0x74] sm:$0xf]
        %v289 = vld [vmem:[#allocation5 + $0x78] sm:$0xf]
        %v290 = vld [vmem:[#allocation5 + $0x7c] sm:$0xf]
        %v291 = vld [vmem:[%s240] sm:$0x1]
        %v293 = vlaneseq
        %v294 = vshrl.u32 %v293, 7
        %v295 = vsub.s32 0, %v294
        %v296 = vrot.slane %v291, %v295
        %v314 = vunpack.c.l.b16 %v243
        %v315 = vunpack.c.h.b16 %v243
        %v316 = vunpack.c.l.b16 %v244
        %v317 = vunpack.c.h.b16 %v244
        %v318 = vunpack.c.l.b16 %v245
        %v319 = vunpack.c.h.b16 %v245
        %v320 = vunpack.c.l.b16 %v246
        %v321 = vunpack.c.h.b16 %v246
        %v322 = vunpack.c.l.b16 %v247
        %v323 = vunpack.c.h.b16 %v247
        %v324 = vunpack.c.l.b16 %v248
        %v325 = vunpack.c.h.b16 %v248
        %v326 = vunpack.c.l.b16 %v249
        %v327 = vunpack.c.h.b16 %v249
        %v328 = vunpack.c.l.b16 %v250
        %v329 = vunpack.c.h.b16 %v250
        %v330 = vunpack.c.l.b16 %v251
        %v331 = vunpack.c.h.b16 %v251
        %v332 = vunpack.c.l.b16 %v252
        %v333 = vunpack.c.h.b16 %v252
        %v334 = vunpack.c.l.b16 %v253
        %v335 = vunpack.c.h.b16 %v253
        %v336 = vunpack.c.l.b16 %v254
        %v337 = vunpack.c.h.b16 %v254
        %v338 = vunpack.c.l.b16 %v255
        %v339 = vunpack.c.h.b16 %v255
        %v340 = vunpack.c.l.b16 %v256
        %v341 = vunpack.c.h.b16 %v256
        %v342 = vunpack.c.l.b16 %v257
        %v343 = vunpack.c.h.b16 %v257
        %v344 = vunpack.c.l.b16 %v258
        %v345 = vunpack.c.h.b16 %v258
        %v346 = vpack.c.b16 %v316, %v314
        %v347 = vpack.c.b16 %v317, %v315
        %v348 = vpack.c.b16 %v320, %v318
        %v349 = vpack.c.b16 %v321, %v319
        %v350 = vpack.c.b16 %v324, %v322
        %v351 = vpack.c.b16 %v325, %v323
        %v352 = vpack.c.b16 %v328, %v326
        %v353 = vpack.c.b16 %v329, %v327
        %v354 = vpack.c.b16 %v332, %v330
        %v355 = vpack.c.b16 %v333, %v331
        %v356 = vpack.c.b16 %v336, %v334
        %v357 = vpack.c.b16 %v337, %v335
        %v358 = vpack.c.b16 %v340, %v338
        %v359 = vpack.c.b16 %v341, %v339
        %v360 = vpack.c.b16 %v344, %v342
        %v361 = vpack.c.b16 %v345, %v343
        %v410 = vunpack.c.l.b16 %v259
        %v411 = vunpack.c.l.b16 %v260
        %v412 = vunpack.c.l.b16 %v261
        %v413 = vunpack.c.l.b16 %v262
        %v414 = vunpack.c.l.b16 %v263
        %v415 = vunpack.c.l.b16 %v264
        %v416 = vunpack.c.l.b16 %v265
        %v417 = vunpack.c.l.b16 %v266
        %v418 = vunpack.c.l.b16 %v267
        %v419 = vunpack.c.l.b16 %v268
        %v420 = vunpack.c.l.b16 %v269
        %v421 = vunpack.c.l.b16 %v270
        %v422 = vunpack.c.l.b16 %v271
        %v423 = vunpack.c.l.b16 %v272
        %v424 = vunpack.c.l.b16 %v273
        %v425 = vunpack.c.l.b16 %v274
        %v426 = vunpack.c.l.b16 %v275
        %v427 = vunpack.c.l.b16 %v276
        %v428 = vunpack.c.l.b16 %v277
        %v429 = vunpack.c.l.b16 %v278
        %v430 = vunpack.c.l.b16 %v279
        %v431 = vunpack.c.l.b16 %v280
        %v432 = vunpack.c.l.b16 %v281
        %v433 = vunpack.c.l.b16 %v282
        %v434 = vunpack.c.l.b16 %v283
        %v435 = vunpack.c.l.b16 %v284
        %v436 = vunpack.c.l.b16 %v285
        %v437 = vunpack.c.l.b16 %v286
        %v438 = vunpack.c.l.b16 %v287
        %v439 = vunpack.c.l.b16 %v288
        %v440 = vunpack.c.l.b16 %v289
        %v441 = vunpack.c.l.b16 %v290
        %v442 = vpack.c.b16 %v411, %v410
        %v443 = vpack.c.b16 %v413, %v412
        %v444 = vpack.c.b16 %v415, %v414
        %v445 = vpack.c.b16 %v417, %v416
        %v446 = vpack.c.b16 %v419, %v418
        %v447 = vpack.c.b16 %v421, %v420
        %v448 = vpack.c.b16 %v423, %v422
        %v449 = vpack.c.b16 %v425, %v424
        %v450 = vpack.c.b16 %v427, %v426
        %v451 = vpack.c.b16 %v429, %v428
        %v452 = vpack.c.b16 %v431, %v430
        %v453 = vpack.c.b16 %v433, %v432
        %v454 = vpack.c.b16 %v435, %v434
        %v455 = vpack.c.b16 %v437, %v436
        %v456 = vpack.c.b16 %v439, %v438
        %v457 = vpack.c.b16 %v441, %v440
        %474 = vmatprep.subr.bf16.mxu0 0
        %475 = vmatpush1.bf16.msra.mxu0 %v449
        %476 = vmatprep.subr.bf16.mxu0 0
        %477 = vmatpush1.bf16.msra.mxu0 %v448
        %478 = vmatprep.subr.bf16.mxu0 0
        %479 = vmatpush1.bf16.msra.mxu0 %v447
        %480 = vmatprep.subr.bf16.mxu0 0
        %481 = vmatpush1.bf16.msra.mxu0 %v446
        %482 = vmatprep.subr.bf16.mxu0 0
        %483 = vmatpush1.bf16.msra.mxu0 %v445
        %484 = vmatprep.subr.bf16.mxu0 0
        %485 = vmatpush1.bf16.msra.mxu0 %v444
        %486 = vmatprep.subr.bf16.mxu0 0
        %487 = vmatpush1.bf16.msra.mxu0 %v443
        %488 = vmatprep.subr.bf16.mxu0 0
        %489 = vmatpush1.bf16.msra.mxu0 %v442
        %490 = vmatprep.subr.bf16.mxu0 0
        %491 = vmatpush2.bf16.msra.mxu0 %v457
        %492 = vmatprep.subr.bf16.mxu0 0
        %493 = vmatpush2.bf16.msra.mxu0 %v456
        %494 = vmatprep.subr.bf16.mxu0 0
        %495 = vmatpush2.bf16.msra.mxu0 %v455
        %496 = vmatprep.subr.bf16.mxu0 0
        %497 = vmatpush2.bf16.msra.mxu0 %v454
        %498 = vmatprep.subr.bf16.mxu0 0
        %499 = vmatpush2.bf16.msra.mxu0 %v453
        %500 = vmatprep.subr.bf16.mxu0 0
        %501 = vmatpush2.bf16.msra.mxu0 %v452
        %502 = vmatprep.subr.bf16.mxu0 0
        %503 = vmatpush2.bf16.msra.mxu0 %v451
        %504 = vmatprep.subr.bf16.mxu0 0
        %505 = vmatpush2.bf16.msra.mxu0 %v450
        %506 = vmatprep.mubr.bf16.mxu0 %v347
        %507 = vmatmul.mubr.bf16.gmra.mxu0 %v346
        %v508 = vpop.f32.mrf.mxu0
        %v509 = vadd.f32 %v296, %v508
        %v510 = vpop.f32.mrf.mxu0
        %v511 = vpop.f32.mrf.mxu0
        %v512 = vadd.f32 %v296, %v511
        %v513 = vpop.f32.mrf.mxu0
        %514 = vmatprep.mubr.bf16.mxu0 %v349
        %515 = vmatmul.mubr.bf16.gmra.mxu0 %v348
        %v516 = vpop.f32.mrf.mxu0
        %v517 = vadd.f32 %v296, %v516
        %v518 = vpop.f32.mrf.mxu0
        %v519 = vpop.f32.mrf.mxu0
        %v520 = vadd.f32 %v296, %v519
        %v521 = vpop.f32.mrf.mxu0
        %522 = vmatprep.mubr.bf16.mxu0 %v351
        %523 = vmatmul.mubr.bf16.gmra.mxu0 %v350
        %v524 = vpop.f32.mrf.mxu0
        %v525 = vadd.f32 %v296, %v524
        %v526 = vpop.f32.mrf.mxu0
        %v527 = vpop.f32.mrf.mxu0
        %v528 = vadd.f32 %v296, %v527
        %v529 = vpop.f32.mrf.mxu0
        %530 = vmatprep.mubr.bf16.mxu0 %v353
        %531 = vmatmul.mubr.bf16.gmra.mxu0 %v352
        %v532 = vpop.f32.mrf.mxu0
        %v533 = vadd.f32 %v296, %v532
        %v534 = vpop.f32.mrf.mxu0
        %v535 = vpop.f32.mrf.mxu0
        %v536 = vadd.f32 %v296, %v535
        %v537 = vpop.f32.mrf.mxu0
        %538 = vmatprep.mubr.bf16.mxu0 %v355
        %539 = vmatmul.mubr.bf16.gmra.mxu0 %v354
        %v540 = vpop.f32.mrf.mxu0
        %v541 = vadd.f32 %v296, %v540
        %v542 = vpop.f32.mrf.mxu0
        %v543 = vpop.f32.mrf.mxu0
        %v544 = vadd.f32 %v296, %v543
        %v545 = vpop.f32.mrf.mxu0
        %546 = vmatprep.mubr.bf16.mxu0 %v357
        %547 = vmatmul.mubr.bf16.gmra.mxu0 %v356
        %v548 = vpop.f32.mrf.mxu0
        %v549 = vadd.f32 %v296, %v548
        %v550 = vpop.f32.mrf.mxu0
        %v551 = vpop.f32.mrf.mxu0
        %v552 = vadd.f32 %v296, %v551
        %v553 = vpop.f32.mrf.mxu0
        %554 = vmatprep.mubr.bf16.mxu0 %v359
        %555 = vmatmul.mubr.bf16.gmra.mxu0 %v358
        %v556 = vpop.f32.mrf.mxu0
        %v557 = vadd.f32 %v296, %v556
        %v558 = vpop.f32.mrf.mxu0
        %v559 = vpop.f32.mrf.mxu0
        %v560 = vadd.f32 %v296, %v559
        %v561 = vpop.f32.mrf.mxu0
        %562 = vmatprep.mubr.bf16.mxu0 %v361
        %563 = vmatmul.mubr.bf16.gmra.mxu0 %v360
        %v564 = vpop.f32.mrf.mxu0
        %v565 = vadd.f32 %v296, %v564
        %v566 = vpop.f32.mrf.mxu0
        %v567 = vpop.f32.mrf.mxu0
        %v568 = vadd.f32 %v296, %v567
        %v569 = vpop.f32.mrf.mxu0
        %570 = vdwg.mxu0
        %v571 = vmax.f32 %v509, 0.0
        %v572 = vmax.f32 %v512, 0.0
        %v573 = vmax.f32 %v517, 0.0
        %v574 = vmax.f32 %v520, 0.0
        %v575 = vmax.f32 %v525, 0.0
        %v576 = vmax.f32 %v528, 0.0
        %v577 = vmax.f32 %v533, 0.0
        %v578 = vmax.f32 %v536, 0.0
        %v579 = vmax.f32 %v541, 0.0
        %v580 = vmax.f32 %v544, 0.0
        %v581 = vmax.f32 %v549, 0.0
        %v582 = vmax.f32 %v552, 0.0
        %v583 = vmax.f32 %v557, 0.0
        %v584 = vmax.f32 %v560, 0.0
        %v585 = vmax.f32 %v565, 0.0
        %v586 = vmax.f32 %v568, 0.0
        %587 = vst [vmem:[%s236] sm:$0xff] %v571
        %588 = vst [vmem:[%s236 + $0x8] sm:$0xff] %v572
        %589 = vst [vmem:[%s236 + $0x10] sm:$0xff] %v573
        %590 = vst [vmem:[%s236 + $0x18] sm:$0xff] %v574
        %591 = vst [vmem:[%s236 + $0x20] sm:$0xff] %v575
        %592 = vst [vmem:[%s236 + $0x28] sm:$0xff] %v576
        %593 = vst [vmem:[%s236 + $0x30] sm:$0xff] %v577
        %594 = vst [vmem:[%s236 + $0x38] sm:$0xff] %v578
        %595 = vst [vmem:[%s236 + $0x40] sm:$0xff] %v579
        %596 = vst [vmem:[%s236 + $0x48] sm:$0xff] %v580
        %597 = vst [vmem:[%s236 + $0x50] sm:$0xff] %v581
        %598 = vst [vmem:[%s236 + $0x58] sm:$0xff] %v582
        %599 = vst [vmem:[%s236 + $0x60] sm:$0xff] %v583
        %600 = vst [vmem:[%s236 + $0x68] sm:$0xff] %v584
        %601 = vst [vmem:[%s236 + $0x70] sm:$0xff] %v585
        %602 = vst [vmem:[%s236 + $0x78] sm:$0xff] %v586
        %s603 = sand.u32 %s121, 1
        %s604 = scalar_lea.sflag [#allocation4], %s603
        %s605 = sand.u32 %s121, 1
        %s606 = smul.addr %s605, 128
        %s607 = scalar_lea.vmem [#allocation7], %s606
        // Predicated region
        $region41: #{tpu_custom_call.1} parent=31 // pred_check
          %p608 = pneg %p131
        $region42: #{tpu_custom_call.1} parent=31 // pred_check_branch
          %610 = sbr.rel (%p608) target = $region44
        $region43: #{tpu_custom_call.1} parent=31 // pred_region
          %s611 = smul.u32 16, %s25
          %s613 = ssub.s32 2048, 2048
          %614 = vsyncadd %s604, %s613
          %s615 = sadd.s32 %s26, %s611
          %s616 = smul.addr %s615, 128
          %s617 = scalar_lea.hbm %s3, %s616
          %s618 = sshll.u32 %s607, 4
          %s619 = int_to_ptr.vmem [resolvable:$true] %s618
          %624 = dma.vmem_to_hbm [thread:$0]  %s619, 2048, %s617, %s604, 128, 128, 8
        $region44: #{tpu_custom_call.1} parent=31 // pred_fallthru
          _
      $region32: #{tpu_custom_call.1} parent=5 // pred_fallthru
        _
      %p625 = scmp.le.s32.totalorder 2, %s16
      // Predicated region
      $region45: #{tpu_custom_call.1} parent=5 // pred_check
        %p626 = pneg %p625
      $region46: #{tpu_custom_call.1} parent=5 // pred_check_branch
        %628 = sbr.rel (%p626) target = $region48
      $region47: #{tpu_custom_call.1} parent=5 // pred_region
        %s629 = ssub.s32 %s16, 2
        // Predicated region
        $region49: #{tpu_custom_call.1} parent=47 // pred_check
          %p630 = pneg %p137
        $region50: #{tpu_custom_call.1} parent=47 // pred_check_branch
          %632 = sbr.rel (%p630) target = $region52
        $region51: #{tpu_custom_call.1} parent=47 // pred_region
          %s633 = sand.u32 %s122, 1
          %s634 = scalar_lea.sflag [#allocation4], %s633
          %s635 = sand.u32 %s122, 1
          %s636 = smul.addr %s635, 128
          %s637 = scalar_lea.vmem [#allocation7], %s636
          %638 = dma.done %s634, 2048
        $region52: #{tpu_custom_call.1} parent=47 // pred_fallthru
          _
      $region48: #{tpu_custom_call.1} parent=5 // pred_fallthru
        _
    $region6: #{tpu_custom_call.1} parent=1 // loop_footer
      %s20 = sadd.s32 1, %s16
    $region7: #{tpu_custom_call.1} parent=1 // loop_footer_branch
      %15 = sbr.rel target = $region3
    $region8: #{tpu_custom_call.1} parent=1 // loop_exit
      _
    %639 = vsyncpa [#allocation3], 1
    %s640 = scalar_lea.sflag [#allocation3], 1
    %641 = vsyncpa %s640, 1
    %642 = vsyncpa [#allocation6], 1
    %643 = vsyncpa [#allocation4], 1
    %s644 = scalar_lea.sflag [#allocation4], 1
    %645 = vsyncpa %s644, 1

</llo_original>
